<compile_context>
chip_gen: v6e
topology: v6e:2x2x1
jax: 0.10.0
libtpu: 0.0.40
codegen_flags: <defaults>
</compile_context>

<pallas_src>
import functools

import jax
import jax.numpy as jnp
import numpy as np
from jax.experimental import pallas as pl
from jax.experimental.pallas import tpu as pltpu


def _attention_kernel(x_ref, w_ref, bw_ref, v_ref, bv_ref, o_ref, *,
                      tb, seq, d_out, fold_out, mm_precision):
    # x_ref : (tb*S, D_in)   tb batch elements, sequence-major, flattened
    # w_ref : (D_in, H)      W.weight^T
    # bw_ref: (1, H)         W.bias (f32)
    # v_ref : (H, D_out)     V.weight^T   (or (1, H) when d_out == 1)
    # bv_ref: (1, D_out)     V.bias (f32)
    # o_ref : (tb*S, D_ctx)  or lane-dense folded (tb, S*D_ctx)
    rows = tb * seq
    x = x_ref[...]                                                   # (rows, D_in)

    # energy = tanh(x @ W^T + b_W): one MXU matmul over all tb*S rows.
    energy = jnp.tanh(
        jnp.dot(x, w_ref[...], preferred_element_type=jnp.float32,
                precision=mm_precision)
        + bw_ref[...])                                               # (rows, H) f32

    if d_out == 1:
        # VPU reduction: avoids an N=1 MXU matmul (127/255 idle columns) and
        # the degenerate 1-lane result layout.  v_ref is (1, H) here.
        logits = (jnp.sum(energy * v_ref[...], axis=-1, keepdims=True)
                  + bv_ref[...])                                     # (rows, 1)
    else:
        e_mm = energy.astype(v_ref.dtype) if v_ref.dtype != jnp.float32 else energy
        logits = (jnp.dot(e_mm, v_ref[...], preferred_element_type=jnp.float32,
                          precision=mm_precision)
                  + bv_ref[...])                                     # (rows, d_out)

    # Softmax over the sequence axis, independently per batch element.
    # Leading-dim-only reshape (lane dim untouched, seq % 8 == 0) -> no relayout.
    logits3 = logits.reshape(tb, seq, d_out)
    m = jnp.max(logits3, axis=1, keepdims=True)
    e = jnp.exp(logits3 - m)
    denom = jnp.sum(e, axis=1, keepdims=True)
    attn = (e / denom).reshape(rows, d_out)       # exact normalisation (no vrcp approx)

    # context = attention * features (broadcasts when d_out == 1).
    # Re-read x from the ref to keep the slab's live range short.
    ctx = attn * x_ref[...].astype(jnp.float32)                      # (rows, D_ctx) f32

    if fold_out:
        # Lane-dense store: fold (rows, D_ctx) -> (tb, S*D_ctx) so the HBM
        # writeback uses full-width unmasked stores.
        o_ref[...] = ctx.reshape(tb, seq * ctx.shape[-1]).astype(o_ref.dtype)
    else:
        o_ref[...] = ctx.astype(o_ref.dtype)


def _round_up(n, m):
    return ((n + m - 1) // m) * m


def _fold_ok(tb, batch, seq, d_ctx, row_align):
    # Lane-dense output folding (tb, S*D_ctx): only when the folded block is
    # sublane-aligned and the folded lane extent is a 128 multiple.
    return (d_ctx < 128 and (seq * d_ctx) % 128 == 0
            and (tb % row_align == 0 or tb == batch))


def _vmem_footprint(tb, *, batch, seq, d_in, hidden, d_out, d_ctx,
                    act_itemsize, row_align):
    """Bytes of VMEM this tile choice needs: double-buffered in/out slabs and
    weights, f32 intermediates, with (8,128) padding included."""
    rows = tb * seq
    lane = lambda n: _round_up(n, 128)
    sub = lambda n: _round_up(n, 8)
    in_blk = sub(rows) * lane(d_in) * act_itemsize
    if _fold_ok(tb, batch, seq, d_ctx, row_align):
        out_blk = sub(tb) * lane(seq * d_ctx) * act_itemsize
    else:
        out_blk = sub(rows) * lane(d_ctx) * act_itemsize
    v_rows, v_cols = (1, hidden) if d_out == 1 else (hidden, d_out)
    weights = (sub(d_in) * lane(hidden) + sub(1) * lane(hidden)
               + sub(v_rows) * lane(v_cols) + sub(1) * lane(d_out)) * 4
    interm = sub(rows) * (lane(hidden) + 3 * lane(d_out)) * 4   # energy, logits, e, attn
    return 2 * (in_blk + out_blk) + 2 * weights + interm


def _pick_batch_tile(batch, seq, d_in, hidden, d_out, d_ctx, act_itemsize,
                     budget_bytes):
    # Sublane alignment of (tb*S, ...) blocks: 8 rows for f32, 16 for packed bf16.
    row_align = 8 * (4 // act_itemsize)
    # Keep the grid >= 2 steps so the "parallel" batch axis can shard across
    # v7x's two TensorCores and DMA/compute pipelining has work to overlap.
    cap = batch if batch == 1 else batch // 2
    cands = [t for t in range(1, cap + 1)
             if batch % t == 0 and (t * seq) % row_align == 0]
    if not cands:
        return batch, row_align              # single full-array step (always aligned)
    best = cands[0]
    for t in cands:
        fp = _vmem_footprint(t, batch=batch, seq=seq, d_in=d_in, hidden=hidden,
                             d_out=d_out, d_ctx=d_ctx,
                             act_itemsize=act_itemsize, row_align=row_align)
        if fp <= budget_bytes:
            best = max(best, t)
    return best, row_align


def attention_forward(features, w_weight, w_bias, v_weight, v_bias, *,
                      activation_dtype=jnp.float32,
                      vmem_budget_bytes=24 << 20,      # raise toward 48-64 MiB on v6e
                      vmem_limit_bytes=48 << 20):      # safe on v7x (64 MiB physical)
    """features: (B, S, D_in).  nn.Linear conventions: w_weight (H, D_in),
    w_bias (H,), v_weight (D_out, H), v_bias (D_out,)."""
    features = jnp.asarray(features, jnp.float32)
    B, S, D_in = features.shape
    H = w_weight.shape[0]
    D_out = v_weight.shape[0]
    if D_out not in (1, D_in):
        raise ValueError(
            "attention * features requires output_dim in (1, input_dim); "
            f"got output_dim={D_out}, input_dim={D_in}")
    if S % 8:
        # TODO(synk): pad S to a multiple of 8 and mask padded rows with -inf
        # logits instead of rejecting (keeps the in-kernel reshape tile-aligned).
        raise ValueError("sequence length must be a multiple of 8")
    D_ctx = max(D_out, D_in)

    act_dtype = np.dtype(activation_dtype)
    if act_dtype not in (np.dtype(jnp.float32), np.dtype(jnp.bfloat16)):
        raise ValueError(f"unsupported activation dtype {act_dtype}")
    act_itemsize = act_dtype.itemsize
    # Exact-f32 MXU passes for the f32 path (matches the fp32 PyTorch module);
    # native single-pass bf16 MXU for the bf16 path.
    mm_precision = (jax.lax.Precision.HIGHEST
                    if act_dtype == np.dtype(jnp.float32)
                    else jax.lax.Precision.DEFAULT)

    w_t = jnp.asarray(w_weight, jnp.float32).T.astype(act_dtype)      # (D_in, H)
    bw = jnp.asarray(w_bias, jnp.float32).reshape(1, H)               # (1, H) f32
    if D_out == 1:
        v_in = jnp.asarray(v_weight, jnp.float32).astype(act_dtype)   # (1, H)
    else:
        v_in = jnp.asarray(v_weight, jnp.float32).T.astype(act_dtype) # (H, D_out)
    bv = jnp.asarray(v_bias, jnp.float32).reshape(1, D_out)           # (1, D_out) f32

    tb, row_align = _pick_batch_tile(B, S, D_in, H, D_out, D_ctx,
                                     act_itemsize, vmem_budget_bytes)
    fold_out = _fold_ok(tb, B, S, D_ctx, row_align)
    grid = (B // tb,)

    x_flat = features.reshape(B * S, D_in).astype(act_dtype)

    if fold_out:
        out_shape = jax.ShapeDtypeStruct((B, S * D_ctx), act_dtype)
        out_spec = pl.BlockSpec((tb, S * D_ctx), lambda i: (i, 0))
    else:
        out_shape = jax.ShapeDtypeStruct((B * S, D_ctx), act_dtype)
        out_spec = pl.BlockSpec((tb * S, D_ctx), lambda i: (i, 0))

    # Advisory cost estimate for XLA's scheduler.
    cost = pl.CostEstimate(
        flops=2 * B * S * (D_in * H + H * D_out),
        transcendentals=B * S * (H + D_out),
        bytes_accessed=(act_itemsize * B * S * (D_in + D_ctx)
                        + act_itemsize * (D_in * H + H * D_out)
                        + 4 * (H + D_out)))

    grid_spec = pltpu.PrefetchScalarGridSpec(
        num_scalar_prefetch=0,
        grid=grid,
        in_specs=[
            pl.BlockSpec((tb * S, D_in), lambda i: (i, 0)),   # features slab
            # Constant index maps: weights/biases DMA'd once (their default 2x
            # double-buffers are accounted for in the VMEM budget).
            pl.BlockSpec(w_t.shape, lambda i: (0, 0)),
            pl.BlockSpec(bw.shape, lambda i: (0, 0)),
            pl.BlockSpec(v_in.shape, lambda i: (0, 0)),
            pl.BlockSpec(bv.shape, lambda i: (0, 0)),
        ],
        out_specs=out_spec,
    )

    out = pl.pallas_call(
        functools.partial(_attention_kernel, tb=tb, seq=S, d_out=D_out,
                          fold_out=fold_out, mm_precision=mm_precision),
        out_shape=out_shape,
        grid_spec=grid_spec,
        compiler_params=pltpu.CompilerParams(
            dimension_semantics=("parallel",),   # megacore sharding on v7x
            vmem_limit_bytes=vmem_limit_bytes,
        ),
        cost_estimate=cost,
    )(x_flat, w_t, bw, v_in, bv)

    return out.reshape(B, S, D_ctx)


def _reference(features, w_weight, w_bias, v_weight, v_bias):
    p = jax.lax.Precision.HIGHEST
    energy = jnp.tanh(
        jnp.einsum("bsd,hd->bsh", features, w_weight, precision=p) + w_bias)
    logits = jnp.einsum("bsh,oh->bso", energy, v_weight, precision=p) + v_bias
    attn = jax.nn.softmax(logits, axis=1)
    return attn * features


if __name__ == "__main__":
    def make_inputs(key, B, S, D_in, H, D_out):
        k_x, k_w, k_bw, k_v, k_bv = jax.random.split(key, 5)
        features = jax.random.normal(k_x, (B, S, D_in), jnp.float32)
        bound_w = 1.0 / np.sqrt(D_in)
        w_weight = jax.random.uniform(k_w, (H, D_in), jnp.float32, -bound_w, bound_w)
        w_bias = jax.random.uniform(k_bw, (H,), jnp.float32, -bound_w, bound_w)
        bound_v = 1.0 / np.sqrt(H)
        v_weight = jax.random.uniform(k_v, (D_out, H), jnp.float32, -bound_v, bound_v)
        v_bias = jax.random.uniform(k_bv, (D_out,), jnp.float32, -bound_v, bound_v)
        return features, w_weight, w_bias, v_weight, v_bias

    # (name, B, S, D_in, H, D_out, activation dtype, rtol, atol)
    cases = [
        ("f32_base",    2, 8, 32, 16, 32, jnp.float32, 2e-3, 1e-4),   # grid=2, tb=1
        ("f32_folded", 16, 8, 32, 16, 32, jnp.float32, 2e-3, 1e-4),   # lane-dense output
        ("f32_dout1",   4, 8, 32, 16,  1, jnp.float32, 2e-3, 1e-4),   # VPU-reduce path
        ("bf16_act",   16, 8, 32, 16, 32, jnp.bfloat16, 4e-2, 4e-3),  # bf16 I/O path
    ]
    keys = jax.random.split(jax.random.PRNGKey(0), len(cases))
    for (name, B, S, D_in, H, D_out, act_dt, rtol, atol), k in zip(cases, keys):
        args = make_inputs(k, B, S, D_in, H, D_out)
        out = jax.block_until_ready(attention_forward(*args, activation_dtype=act_dt))
        ref = _reference(*args)
        np.testing.assert_allclose(
            np.asarray(jnp.asarray(out, jnp.float32)), np.asarray(ref),
            rtol=rtol, atol=atol, err_msg=name)
    print("KERNEL_OK")
</pallas_src>

<mosaic_0001>
module attributes {stable_mosaic.version = 11 : i64} {
  func.func @_attention_kernel(%arg0: i32, %arg1: memref<8x32xf32, #tpu.memory_space<vmem>>, %arg2: memref<32x16xf32, #tpu.memory_space<vmem>>, %arg3: memref<1x16xf32, #tpu.memory_space<vmem>>, %arg4: memref<16x32xf32, #tpu.memory_space<vmem>>, %arg5: memref<1x32xf32, #tpu.memory_space<vmem>>, %arg6: memref<8x32xf32, #tpu.memory_space<vmem>>) attributes {dimension_semantics = [#tpu.dimension_semantics<parallel>], iteration_bounds = array<i64: 2>, scalar_prefetch = 0 : i64, scratch_operands = 0 : i64, tpu.core_type = #tpu.core_type<tc>, window_params = [{transform_indices = @transform_0, window_bounds = array<i64: 8, 32>}, {pipeline_mode = #tpu.pipeline_mode<synchronous>, transform_indices = @transform_1, window_bounds = array<i64: 32, 16>}, {pipeline_mode = #tpu.pipeline_mode<synchronous>, transform_indices = @transform_2, window_bounds = array<i64: 1, 16>}, {pipeline_mode = #tpu.pipeline_mode<synchronous>, transform_indices = @transform_3, window_bounds = array<i64: 16, 32>}, {pipeline_mode = #tpu.pipeline_mode<synchronous>, transform_indices = @transform_4, window_bounds = array<i64: 1, 32>}, {transform_indices = @transform_5, window_bounds = array<i64: 8, 32>}]} {
    %c0 = arith.constant 0 : index
    %c0_0 = arith.constant 0 : index
    %0 = vector.load %arg1[%c0, %c0_0] : memref<8x32xf32, #tpu.memory_space<vmem>>, vector<8x32xf32>
    %c0_1 = arith.constant 0 : index
    %c0_2 = arith.constant 0 : index
    %1 = vector.load %arg2[%c0_1, %c0_2] : memref<32x16xf32, #tpu.memory_space<vmem>>, vector<32x16xf32>
    %cst = arith.constant dense<0.000000e+00> : vector<8x16xf32>
    %2 = tpu.matmul %0, %1, %cst {dimension_numbers = #tpu.dot_dimension_numbers<[1], [0], [0], [1], [0, 0, 1, 1], [], []>, precision = #tpu.contract_precision<fp32>} : vector<8x32xf32>, vector<32x16xf32>, vector<8x16xf32> -> vector<8x16xf32>
    %c0_3 = arith.constant 0 : index
    %c0_4 = arith.constant 0 : index
    %3 = vector.load %arg3[%c0_3, %c0_4] : memref<1x16xf32, #tpu.memory_space<vmem>>, vector<1x16xf32>
    %4 = vector.broadcast %3 : vector<1x16xf32> to vector<8x16xf32>
    %5 = arith.addf %2, %4 : vector<8x16xf32>
    %6 = math.tanh %5 : vector<8x16xf32>
    %c0_5 = arith.constant 0 : index
    %c0_6 = arith.constant 0 : index
    %7 = vector.load %arg4[%c0_5, %c0_6] : memref<16x32xf32, #tpu.memory_space<vmem>>, vector<16x32xf32>
    %cst_7 = arith.constant dense<0.000000e+00> : vector<8x32xf32>
    %8 = tpu.matmul %6, %7, %cst_7 {dimension_numbers = #tpu.dot_dimension_numbers<[1], [0], [0], [1], [0, 0, 1, 1], [], []>, precision = #tpu.contract_precision<fp32>} : vector<8x16xf32>, vector<16x32xf32>, vector<8x32xf32> -> vector<8x32xf32>
    %c0_8 = arith.constant 0 : index
    %c0_9 = arith.constant 0 : index
    %9 = vector.load %arg5[%c0_8, %c0_9] : memref<1x32xf32, #tpu.memory_space<vmem>>, vector<1x32xf32>
    %10 = vector.broadcast %9 : vector<1x32xf32> to vector<8x32xf32>
    %11 = arith.addf %8, %10 : vector<8x32xf32>
    %12 = vector.shape_cast %11 : vector<8x32xf32> to vector<1x8x32xf32>
    %cst_10 = arith.constant dense<0xFF800000> : vector<1x32xf32>
    %13 = vector.multi_reduction <maximumf>, %12, %cst_10 [1] : vector<1x8x32xf32> to vector<1x32xf32>
    %14 = vector.shape_cast %13 : vector<1x32xf32> to vector<1x1x32xf32>
    %15 = vector.broadcast %14 : vector<1x1x32xf32> to vector<1x8x32xf32>
    %16 = arith.subf %12, %15 : vector<1x8x32xf32>
    %17 = math.exp %16 : vector<1x8x32xf32>
    %cst_11 = arith.constant dense<0.000000e+00> : vector<1x32xf32>
    %18 = vector.multi_reduction <add>, %17, %cst_11 [1] : vector<1x8x32xf32> to vector<1x32xf32>
    %19 = vector.shape_cast %18 : vector<1x32xf32> to vector<1x1x32xf32>
    %20 = vector.broadcast %19 : vector<1x1x32xf32> to vector<1x8x32xf32>
    %21 = arith.divf %17, %20 : vector<1x8x32xf32>
    %22 = vector.shape_cast %21 : vector<1x8x32xf32> to vector<8x32xf32>
    %c0_12 = arith.constant 0 : index
    %c0_13 = arith.constant 0 : index
    %23 = vector.load %arg1[%c0_12, %c0_13] : memref<8x32xf32, #tpu.memory_space<vmem>>, vector<8x32xf32>
    %24 = arith.mulf %22, %23 : vector<8x32xf32>
    %c0_14 = arith.constant 0 : index
    %c0_15 = arith.constant 0 : index
    %25 = vector.load %arg6[%c0_14, %c0_15] : memref<8x32xf32, #tpu.memory_space<vmem>>, vector<8x32xf32>
    tpu.vector_store %arg6[%c0_14, %c0_15], %24 {strides = array<i32>} : memref<8x32xf32, #tpu.memory_space<vmem>>, vector<8x32xf32>,
    return
  }
  func.func @transform_0(%arg0: i32) -> (i32, i32) {
    %c0_i32 = arith.constant 0 : i32
    %c0_i32_0 = arith.constant 0 : i32
    return %arg0, %c0_i32 : i32, i32
  }
  func.func @transform_1(%arg0: i32) -> (i32, i32) {
    %c0_i32 = arith.constant 0 : i32
    %c0_i32_0 = arith.constant 0 : i32
    %c0_i32_1 = arith.constant 0 : i32
    return %c0_i32, %c0_i32_0 : i32, i32
  }
  func.func @transform_2(%arg0: i32) -> (i32, i32) {
    %c0_i32 = arith.constant 0 : i32
    %c0_i32_0 = arith.constant 0 : i32
    %c0_i32_1 = arith.constant 0 : i32
    return %c0_i32, %c0_i32_0 : i32, i32
  }
  func.func @transform_3(%arg0: i32) -> (i32, i32) {
    %c0_i32 = arith.constant 0 : i32
    %c0_i32_0 = arith.constant 0 : i32
    %c0_i32_1 = arith.constant 0 : i32
    return %c0_i32, %c0_i32_0 : i32, i32
  }
  func.func @transform_4(%arg0: i32) -> (i32, i32) {
    %c0_i32 = arith.constant 0 : i32
    %c0_i32_0 = arith.constant 0 : i32
    %c0_i32_1 = arith.constant 0 : i32
    return %c0_i32, %c0_i32_0 : i32, i32
  }
  func.func @transform_5(%arg0: i32) -> (i32, i32) {
    %c0_i32 = arith.constant 0 : i32
    %c0_i32_0 = arith.constant 0 : i32
    return %arg0, %c0_i32 : i32, i32
  }
}

</mosaic_0001>

<llo_original>
// kernel: tpu_custom_call.1
$region0: #{tpu_custom_call.1}
  #allocation0 [shape = 'u32[]', space=smem, size = 0x4, offset = 0x4, fixed_abs, tag = 'smem constant byte address 0x4 - core index']
  #allocation1 [shape = 'u32[144,128]{1,0:T(1,128)}', space=vmem, size = 0x12000, scoped, tag = 'internal scratch']
  %s0 = inlined_call_operand.vmem [shape: f32[16,32], index: 0, kind: input, shape index: {}]
  %s1 = inlined_call_operand.vmem [shape: f32[32,16], index: 1, kind: input, shape index: {}]
  %s2 = inlined_call_operand.vmem [shape: f32[1,16], index: 2, kind: input, shape index: {}]
  %s3 = inlined_call_operand.vmem [shape: f32[16,32], index: 3, kind: input, shape index: {}]
  %s4 = inlined_call_operand.vmem [shape: f32[1,32], index: 4, kind: input, shape index: {}]
  %s5 = inlined_call_operand.hbm [shape: f32[16,32], index: 5, kind: output, shape index: {}]
  %s6 = sld [smem:[#allocation0]]
  $region53: #{tpu_custom_call.1} parent=0
    _
  %s8 = ssub.s32 1, %s6
  %s9 = scalar_select 0, %s8, %s6
  $region1: #{tpu_custom_call.1} parent=0
    #allocation2 [shape = 'u8[8192]{0}', space=vmem, size = 0x2000, scoped, tag = 'output window, operand 0']
    #allocation3 [shape = 's32[2]{0}', space=sflag, size = 0x8, scoped, tag = 'scoped memory for tpu_custom_call.1']
    %10 = vsyncpa [#allocation3], 0
    %s11 = scalar_lea.sflag [#allocation3], 1
    %12 = vsyncpa %s11, 0
    loop: start=0, step=1, limit=4
    $region2: #{tpu_custom_call.1} parent=1 // loop_pre_header
      _
    $region3: #{tpu_custom_call.1} parent=1 // loop_header
      %s14 = sphi 0, %s18
      %p15 = scmp.ge.s32.totalorder %s14, 4
      %s24 = sphi 0, %s26
      %s27 = sphi 0, %s24
      %s28 = sphi 0, %s27
      %s44 = sphi 0, %s28
      %s48 = sphi 0, %s48
      %s50 = sphi 0, %s48
      %s51 = sphi 0, %s50
      %s65 = sphi 0, %s51
      %s69 = sphi 0, %s69
      %s71 = sphi 0, %s69
      %s72 = sphi 0, %s71
      %s86 = sphi 0, %s72
      %s90 = sphi 0, %s90
      %s92 = sphi 0, %s90
      %s93 = sphi 0, %s92
      %s107 = sphi 0, %s93
      %s111 = sphi 0, %s111
      %s113 = sphi 0, %s111
      %s114 = sphi 0, %s113
      %s128 = sphi 0, %s114
      %s134 = sphi 0, %s136
      %s137 = sphi 0, %s134
      %s138 = sphi 0, %s137
      %s154 = sphi 0, %s138
    $region4: #{tpu_custom_call.1} parent=1 // loop_header_branch
      %17 = sbr.rel (%p15) target = $region8
    $region5: #{tpu_custom_call.1} parent=1 // loop_body
      %s19 = ssub.s32 %s14, 1
      %s20 = ssub.s32 %s14, 2
      %s21 = sadd.s32 %s14, 1
      %s22 = ssub.s32 %s14, %s21
      %p23 = scmp.eq.s32.totalorder %s22, 0
      %s25 = sadd.s32 %s24, 1
      %s26 = scalar_select %p23, %s24, %s25
      %p29 = pneg %p23
      %p30 = scmp.eq.s32.totalorder %s14, 1
      %p31 = por %p29, %p30
      %p32 = scmp.ne.s32.totalorder %s24, %s27
      %p33 = scmp.eq.s32.totalorder %s14, 0
      %p34 = por %p32, %p33
      %p35 = scmp.ne.s32.totalorder %s24, %s27
      %p36 = scmp.eq.s32.totalorder %s19, 1
      %p37 = por %p35, %p36
      %p38 = scmp.ne.s32.totalorder %s27, %s28
      %p39 = scmp.eq.s32.totalorder %s19, 0
      %p40 = por %p38, %p39
      %p41 = scmp.ne.s32.totalorder %s27, %s28
      %p42 = scmp.eq.s32.totalorder %s20, 1
      %p43 = por %p41, %p42
      %p45 = scmp.ne.s32.totalorder %s28, %s44
      %p46 = scmp.eq.s32.totalorder %s20, 0
      %p47 = por %p45, %p46
      %s49 = sadd.s32 %s48, 1
      %p52 = scmp.eq.s32.totalorder %s14, 1
      %p53 = scmp.ne.s32.totalorder %s48, %s50
      %p54 = scmp.eq.s32.totalorder %s14, 0
      %p55 = por %p53, %p54
      %p56 = scmp.ne.s32.totalorder %s48, %s50
      %p57 = scmp.eq.s32.totalorder %s19, 1
      %p58 = por %p56, %p57
      %p59 = scmp.ne.s32.totalorder %s50, %s51
      %p60 = scmp.eq.s32.totalorder %s19, 0
      %p61 = por %p59, %p60
      %p62 = scmp.ne.s32.totalorder %s50, %s51
      %p63 = scmp.eq.s32.totalorder %s20, 1
      %p64 = por %p62, %p63
      %p66 = scmp.ne.s32.totalorder %s51, %s65
      %p67 = scmp.eq.s32.totalorder %s20, 0
      %p68 = por %p66, %p67
      %s70 = sadd.s32 %s69, 1
      %p73 = scmp.eq.s32.totalorder %s14, 1
      %p74 = scmp.ne.s32.totalorder %s69, %s71
      %p75 = scmp.eq.s32.totalorder %s14, 0
      %p76 = por %p74, %p75
      %p77 = scmp.ne.s32.totalorder %s69, %s71
      %p78 = scmp.eq.s32.totalorder %s19, 1
      %p79 = por %p77, %p78
      %p80 = scmp.ne.s32.totalorder %s71, %s72
      %p81 = scmp.eq.s32.totalorder %s19, 0
      %p82 = por %p80, %p81
      %p83 = scmp.ne.s32.totalorder %s71, %s72
      %p84 = scmp.eq.s32.totalorder %s20, 1
      %p85 = por %p83, %p84
      %p87 = scmp.ne.s32.totalorder %s72, %s86
      %p88 = scmp.eq.s32.totalorder %s20, 0
      %p89 = por %p87, %p88
      %s91 = sadd.s32 %s90, 1
      %p94 = scmp.eq.s32.totalorder %s14, 1
      %p95 = scmp.ne.s32.totalorder %s90, %s92
      %p96 = scmp.eq.s32.totalorder %s14, 0
      %p97 = por %p95, %p96
      %p98 = scmp.ne.s32.totalorder %s90, %s92
      %p99 = scmp.eq.s32.totalorder %s19, 1
      %p100 = por %p98, %p99
      %p101 = scmp.ne.s32.totalorder %s92, %s93
      %p102 = scmp.eq.s32.totalorder %s19, 0
      %p103 = por %p101, %p102
      %p104 = scmp.ne.s32.totalorder %s92, %s93
      %p105 = scmp.eq.s32.totalorder %s20, 1
      %p106 = por %p104, %p105
      %p108 = scmp.ne.s32.totalorder %s93, %s107
      %p109 = scmp.eq.s32.totalorder %s20, 0
      %p110 = por %p108, %p109
      %s112 = sadd.s32 %s111, 1
      %p115 = scmp.eq.s32.totalorder %s14, 1
      %p116 = scmp.ne.s32.totalorder %s111, %s113
      %p117 = scmp.eq.s32.totalorder %s14, 0
      %p118 = por %p116, %p117
      %p119 = scmp.ne.s32.totalorder %s111, %s113
      %p120 = scmp.eq.s32.totalorder %s19, 1
      %p121 = por %p119, %p120
      %p122 = scmp.ne.s32.totalorder %s113, %s114
      %p123 = scmp.eq.s32.totalorder %s19, 0
      %p124 = por %p122, %p123
      %p125 = scmp.ne.s32.totalorder %s113, %s114
      %p126 = scmp.eq.s32.totalorder %s20, 1
      %p127 = por %p125, %p126
      %p129 = scmp.ne.s32.totalorder %s114, %s128
      %p130 = scmp.eq.s32.totalorder %s20, 0
      %p131 = por %p129, %p130
      %s132 = ssub.s32 %s14, %s21
      %p133 = scmp.eq.s32.totalorder %s132, 0
      %s135 = sadd.s32 %s134, 1
      %s136 = scalar_select %p133, %s134, %s135
      %p139 = pneg %p133
      %p140 = scmp.eq.s32.totalorder %s14, 1
      %p141 = por %p139, %p140
      %p142 = scmp.ne.s32.totalorder %s134, %s137
      %p143 = scmp.eq.s32.totalorder %s14, 0
      %p144 = por %p142, %p143
      %p145 = scmp.ne.s32.totalorder %s134, %s137
      %p146 = scmp.eq.s32.totalorder %s19, 1
      %p147 = por %p145, %p146
      %p148 = scmp.ne.s32.totalorder %s137, %s138
      %p149 = scmp.eq.s32.totalorder %s19, 0
      %p150 = por %p148, %p149
      %p151 = scmp.ne.s32.totalorder %s137, %s138
      %p152 = scmp.eq.s32.totalorder %s20, 1
      %p153 = por %p151, %p152
      %p155 = scmp.ne.s32.totalorder %s138, %s154
      %p156 = scmp.eq.s32.totalorder %s20, 0
      %p157 = por %p155, %p156
      %p158 = scmp.le.s32.totalorder 1, %s14
      %p159 = scmp.lt.s32.totalorder %s14, 3
      %p160 = pnand %p158, %p159
      %p161 = pneg %p160
      // Predicated region
      $region9: #{tpu_custom_call.1} parent=5 // pred_check
        _
      $region10: #{tpu_custom_call.1} parent=5 // pred_check_branch
        %163 = sbr.rel (%p160) target = $region12
      $region11: #{tpu_custom_call.1} parent=5 // pred_region
        %s164 = ssub.s32 %s14, 1
        // Predicated region
        $region13: #{tpu_custom_call.1} parent=11 // pred_check
          %p165 = pneg %p61
        $region14: #{tpu_custom_call.1} parent=11 // pred_check_branch
          %167 = sbr.rel (%p165) target = $region16
        $region15: #{tpu_custom_call.1} parent=11 // pred_region
          _
        $region16: #{tpu_custom_call.1} parent=11 // pred_fallthru
          _
        // Predicated region
        $region17: #{tpu_custom_call.1} parent=11 // pred_check
          %p168 = pneg %p82
        $region18: #{tpu_custom_call.1} parent=11 // pred_check_branch
          %170 = sbr.rel (%p168) target = $region20
        $region19: #{tpu_custom_call.1} parent=11 // pred_region
          _
        $region20: #{tpu_custom_call.1} parent=11 // pred_fallthru
          _
        // Predicated region
        $region21: #{tpu_custom_call.1} parent=11 // pred_check
          %p171 = pneg %p103
        $region22: #{tpu_custom_call.1} parent=11 // pred_check_branch
          %173 = sbr.rel (%p171) target = $region24
        $region23: #{tpu_custom_call.1} parent=11 // pred_region
          _
        $region24: #{tpu_custom_call.1} parent=11 // pred_fallthru
          _
        // Predicated region
        $region25: #{tpu_custom_call.1} parent=11 // pred_check
          %p174 = pneg %p124
        $region26: #{tpu_custom_call.1} parent=11 // pred_check_branch
          %176 = sbr.rel (%p174) target = $region28
        $region27: #{tpu_custom_call.1} parent=11 // pred_region
          _
        $region28: #{tpu_custom_call.1} parent=11 // pred_fallthru
          _
      $region12: #{tpu_custom_call.1} parent=5 // pred_fallthru
        _
      %p177 = scmp.lt.s32.totalorder %s14, 2
      // Predicated region
      $region29: #{tpu_custom_call.1} parent=5 // pred_check
        %p178 = pneg %p177
      $region30: #{tpu_custom_call.1} parent=5 // pred_check_branch
        %180 = sbr.rel (%p178) target = $region32
      $region31: #{tpu_custom_call.1} parent=5 // pred_region
        // Predicated region
        $region33: #{tpu_custom_call.1} parent=31 // pred_check
          %p181 = pneg %p34
        $region34: #{tpu_custom_call.1} parent=31 // pred_check_branch
          %183 = sbr.rel (%p181) target = $region36
        $region35: #{tpu_custom_call.1} parent=31 // pred_region
          %p184 = scmp.lt.s32.totalorder %s14, 1
          %s185 = scalar_select %p184, %s14, 1
          %s186 = smul.addr %s185, 8
          %s187 = scalar_lea.vmem %s0, %s186
        $region36: #{tpu_custom_call.1} parent=31 // pred_fallthru
          _
      $region32: #{tpu_custom_call.1} parent=5 // pred_fallthru
        _
      %p188 = scmp.le.s32.totalorder 1, %s14
      %p189 = scmp.lt.s32.totalorder %s14, 3
      %p190 = pnand %p188, %p189
      %p191 = pneg %p190
      // Predicated region
      $region37: #{tpu_custom_call.1} parent=5 // pred_check
        _
      $region38: #{tpu_custom_call.1} parent=5 // pred_check_branch
        %193 = sbr.rel (%p190) target = $region40
      $region39: #{tpu_custom_call.1} parent=5 // pred_region
        %s194 = ssub.s32 %s14, 1
        %p195 = scmp.lt.s32.totalorder %s19, 1
        %s196 = scalar_select %p195, %s19, 1
        %s197 = smul.addr %s196, 8
        %s198 = scalar_lea.vmem %s0, %s197
        %p199 = pneg %p40
        %p200 = pneg %p37
        %p201 = pneg %p61
        %p202 = pneg %p58
        %p203 = pneg %p82
        %p204 = pneg %p79
        %p205 = pneg %p103
        %p206 = pneg %p100
        %p207 = pneg %p124
        %p208 = pneg %p121
        %p209 = pneg %p150
        %p210 = pneg %p147
        %s211 = sand.u32 %s137, 1
        %s212 = scalar_lea.sflag [#allocation3], %s211
        %s213 = sand.u32 %s137, 1
        %s214 = smul.addr %s213, 8
        %s215 = scalar_lea.vmem [#allocation2], %s214
        %p216 = scmp.lt.s32.totalorder %s19, 1
        %s217 = scalar_select %p216, %s19, 1
        %s218 = smul.addr %s217, 8
        %s219 = scalar_lea.vmem %s0, %s218
        %v220 = vld [vmem:[%s219] sm:$0xff]
        %v221 = vld [vmem:[%s1] sm:$0xff]
        %v222 = vld [vmem:[%s1 + $0x8] sm:$0xff]
        %v223 = vld [vmem:[%s1 + $0x10] sm:$0xff]
        %v224 = vld [vmem:[%s1 + $0x18] sm:$0xff]
        %v225 = vld [vmem:[%s2] sm:$0x1]
        %v227 = vlaneseq
        %v228 = vshrl.u32 %v227, 7
        %v229 = vsub.s32 0, %v228
        %v230 = vrot.slane %v225, %v229
        %vm232 = vcmask 261120
        %v234 = vsel %vm232, %v220, 0
        %236 = vmatprep.subr.mxu0 0.0
        %237 = vmatpush1.msra.mxu0 0.0
        %238 = vmatprep.subr.mxu0 0.0
        %239 = vmatpush1.msra.mxu0 0.0
        %240 = vmatprep.subr.mxu0 0.0
        %241 = vmatpush1.msra.mxu0 0.0
        %242 = vmatprep.subr.mxu0 0.0
        %243 = vmatpush1.msra.mxu0 0.0
        %244 = vmatprep.subr.mxu0 0.0
        %245 = vmatpush1.msra.mxu0 0.0
        %246 = vmatprep.subr.mxu0 0.0
        %247 = vmatpush1.msra.mxu0 0.0
        %248 = vmatprep.subr.mxu0 0.0
        %249 = vmatpush1.msra.mxu0 0.0
        %250 = vmatprep.subr.mxu0 0.0
        %251 = vmatpush1.msra.mxu0 0.0
        %252 = vmatprep.subr.mxu0 0.0
        %253 = vmatpush1.msra.mxu0 0.0
        %254 = vmatprep.subr.mxu0 0.0
        %255 = vmatpush1.msra.mxu0 0.0
        %256 = vmatprep.subr.mxu0 0.0
        %257 = vmatpush1.msra.mxu0 0.0
        %258 = vmatprep.subr.mxu0 0.0
        %259 = vmatpush1.msra.mxu0 0.0
        %260 = vmatprep.subr.mxu0 0.0
        %v261 = vand.u32 %v224, 4294901760
        %262 = vmatpush1.msra.mxu0 %v261
        %263 = vmatprep.subr.mxu0 0.0
        %v264 = vand.u32 %v223, 4294901760
        %265 = vmatpush1.msra.mxu0 %v264
        %266 = vmatprep.subr.mxu0 0.0
        %v267 = vand.u32 %v222, 4294901760
        %268 = vmatpush1.msra.mxu0 %v267
        %269 = vmatprep.subr.mxu0 0.0
        %v270 = vand.u32 %v221, 4294901760
        %271 = vmatpush1.msra.mxu0 %v270
        %272 = vmatprep.subr.mxu0 0.0
        %273 = vmatpush2.msra.mxu0 0.0
        %274 = vmatprep.subr.mxu0 0.0
        %275 = vmatpush2.msra.mxu0 0.0
        %276 = vmatprep.subr.mxu0 0.0
        %277 = vmatpush2.msra.mxu0 0.0
        %278 = vmatprep.subr.mxu0 0.0
        %279 = vmatpush2.msra.mxu0 0.0
        %280 = vmatprep.subr.mxu0 0.0
        %281 = vmatpush2.msra.mxu0 0.0
        %282 = vmatprep.subr.mxu0 0.0
        %283 = vmatpush2.msra.mxu0 0.0
        %284 = vmatprep.subr.mxu0 0.0
        %285 = vmatpush2.msra.mxu0 0.0
        %286 = vmatprep.subr.mxu0 0.0
        %287 = vmatpush2.msra.mxu0 0.0
        %288 = vmatprep.subr.mxu0 0.0
        %289 = vmatpush2.msra.mxu0 0.0
        %290 = vmatprep.subr.mxu0 0.0
        %291 = vmatpush2.msra.mxu0 0.0
        %292 = vmatprep.subr.mxu0 0.0
        %293 = vmatpush2.msra.mxu0 0.0
        %294 = vmatprep.subr.mxu0 0.0
        %295 = vmatpush2.msra.mxu0 0.0
        %296 = vmatprep.subr.mxu0 0.0
        %297 = vmatpush2.msra.mxu0 0.0
        %298 = vmatprep.subr.mxu0 0.0
        %299 = vmatpush2.msra.mxu0 0.0
        %300 = vmatprep.subr.mxu0 0.0
        %301 = vmatpush2.msra.mxu0 0.0
        %302 = vmatprep.subr.mxu0 0.0
        %303 = vmatpush2.msra.mxu0 0.0
        %304 = vmatprep.mubr.f32.mxu0 0.0
        %v305 = vand.u32 %v234, 4294901760
        %v306 = vsub.f32 %v234, %v305
        %v307 = vand.u32 %v306, 4294901760
        %v308 = vsub.f32 %v306, %v307
        %v309 = vand.u32 %v308, 4294901760
        %310 = vmatmul.mubr.f32.gmra.mxu0 %v309
        %v311 = vpop.f32.mrf.mxu0
        %v312 = vadd.f32 %v230, %v311
        %v313 = vpop.f32.mrf.mxu0
        %314 = vdwg.mxu0
        %315 = vmatprep.subr.mxu0 0.0
        %316 = vmatpush1.msra.mxu0 0.0
        %317 = vmatprep.subr.mxu0 0.0
        %318 = vmatpush1.msra.mxu0 0.0
        %319 = vmatprep.subr.mxu0 0.0
        %320 = vmatpush1.msra.mxu0 0.0
        %321 = vmatprep.subr.mxu0 0.0
        %322 = vmatpush1.msra.mxu0 0.0
        %323 = vmatprep.subr.mxu0 0.0
        %324 = vmatpush1.msra.mxu0 0.0
        %325 = vmatprep.subr.mxu0 0.0
        %326 = vmatpush1.msra.mxu0 0.0
        %327 = vmatprep.subr.mxu0 0.0
        %328 = vmatpush1.msra.mxu0 0.0
        %329 = vmatprep.subr.mxu0 0.0
        %330 = vmatpush1.msra.mxu0 0.0
        %331 = vmatprep.subr.mxu0 0.0
        %332 = vmatpush1.msra.mxu0 0.0
        %333 = vmatprep.subr.mxu0 0.0
        %334 = vmatpush1.msra.mxu0 0.0
        %335 = vmatprep.subr.mxu0 0.0
        %336 = vmatpush1.msra.mxu0 0.0
        %337 = vmatprep.subr.mxu0 0.0
        %338 = vmatpush1.msra.mxu0 0.0
        %339 = vmatprep.subr.mxu0 0.0
        %v340 = vand.u32 %v224, 4294901760
        %v341 = vsub.f32 %v224, %v340
        %v342 = vand.u32 %v341, 4294901760
        %v343 = vsub.f32 %v341, %v342
        %v344 = vand.u32 %v343, 4294901760
        %345 = vmatpush1.msra.mxu0 %v344
        %346 = vmatprep.subr.mxu0 0.0
        %v347 = vand.u32 %v223, 4294901760
        %v348 = vsub.f32 %v223, %v347
        %v349 = vand.u32 %v348, 4294901760
        %v350 = vsub.f32 %v348, %v349
        %v351 = vand.u32 %v350, 4294901760
        %352 = vmatpush1.msra.mxu0 %v351
        %353 = vmatprep.subr.mxu0 0.0
        %v354 = vand.u32 %v222, 4294901760
        %v355 = vsub.f32 %v222, %v354
        %v356 = vand.u32 %v355, 4294901760
        %v357 = vsub.f32 %v355, %v356
        %v358 = vand.u32 %v357, 4294901760
        %359 = vmatpush1.msra.mxu0 %v358
        %360 = vmatprep.subr.mxu0 0.0
        %v361 = vand.u32 %v221, 4294901760
        %v362 = vsub.f32 %v221, %v361
        %v363 = vand.u32 %v362, 4294901760
        %v364 = vsub.f32 %v362, %v363
        %v365 = vand.u32 %v364, 4294901760
        %366 = vmatpush1.msra.mxu0 %v365
        %367 = vmatprep.subr.mxu0 0.0
        %368 = vmatpush2.msra.mxu0 0.0
        %369 = vmatprep.subr.mxu0 0.0
        %370 = vmatpush2.msra.mxu0 0.0
        %371 = vmatprep.subr.mxu0 0.0
        %372 = vmatpush2.msra.mxu0 0.0
        %373 = vmatprep.subr.mxu0 0.0
        %374 = vmatpush2.msra.mxu0 0.0
        %375 = vmatprep.subr.mxu0 0.0
        %376 = vmatpush2.msra.mxu0 0.0
        %377 = vmatprep.subr.mxu0 0.0
        %378 = vmatpush2.msra.mxu0 0.0
        %379 = vmatprep.subr.mxu0 0.0
        %380 = vmatpush2.msra.mxu0 0.0
        %381 = vmatprep.subr.mxu0 0.0
        %382 = vmatpush2.msra.mxu0 0.0
        %383 = vmatprep.subr.mxu0 0.0
        %384 = vmatpush2.msra.mxu0 0.0
        %385 = vmatprep.subr.mxu0 0.0
        %386 = vmatpush2.msra.mxu0 0.0
        %387 = vmatprep.subr.mxu0 0.0
        %388 = vmatpush2.msra.mxu0 0.0
        %389 = vmatprep.subr.mxu0 0.0
        %390 = vmatpush2.msra.mxu0 0.0
        %391 = vmatprep.subr.mxu0 0.0
        %392 = vmatpush2.msra.mxu0 0.0
        %393 = vmatprep.subr.mxu0 0.0
        %394 = vmatpush2.msra.mxu0 0.0
        %395 = vmatprep.subr.mxu0 0.0
        %396 = vmatpush2.msra.mxu0 0.0
        %397 = vmatprep.subr.mxu0 0.0
        %398 = vmatpush2.msra.mxu0 0.0
        %399 = vmatprep.mubr.f32.mxu0 0.0
        %v400 = vand.u32 %v234, 4294901760
        %401 = vmatmul.mubr.f32.gmra.mxu0 %v400
        %v402 = vpop.f32.mrf.mxu0
        %v403 = vadd.f32 %v312, %v402
        %v404 = vpop.f32.mrf.mxu0
        %405 = vdwg.mxu0
        %406 = vmatprep.subr.mxu0 0.0
        %407 = vmatpush1.msra.mxu0 0.0
        %408 = vmatprep.subr.mxu0 0.0
        %409 = vmatpush1.msra.mxu0 0.0
        %410 = vmatprep.subr.mxu0 0.0
        %411 = vmatpush1.msra.mxu0 0.0
        %412 = vmatprep.subr.mxu0 0.0
        %413 = vmatpush1.msra.mxu0 0.0
        %414 = vmatprep.subr.mxu0 0.0
        %415 = vmatpush1.msra.mxu0 0.0
        %416 = vmatprep.subr.mxu0 0.0
        %417 = vmatpush1.msra.mxu0 0.0
        %418 = vmatprep.subr.mxu0 0.0
        %419 = vmatpush1.msra.mxu0 0.0
        %420 = vmatprep.subr.mxu0 0.0
        %421 = vmatpush1.msra.mxu0 0.0
        %422 = vmatprep.subr.mxu0 0.0
        %423 = vmatpush1.msra.mxu0 0.0
        %424 = vmatprep.subr.mxu0 0.0
        %425 = vmatpush1.msra.mxu0 0.0
        %426 = vmatprep.subr.mxu0 0.0
        %427 = vmatpush1.msra.mxu0 0.0
        %428 = vmatprep.subr.mxu0 0.0
        %429 = vmatpush1.msra.mxu0 0.0
        %430 = vmatprep.subr.mxu0 0.0
        %v431 = vand.u32 %v224, 4294901760
        %v432 = vsub.f32 %v224, %v431
        %433 = vmatpush1.msra.mxu0 %v432
        %434 = vmatprep.subr.mxu0 0.0
        %v435 = vand.u32 %v223, 4294901760
        %v436 = vsub.f32 %v223, %v435
        %437 = vmatpush1.msra.mxu0 %v436
        %438 = vmatprep.subr.mxu0 0.0
        %v439 = vand.u32 %v222, 4294901760
        %v440 = vsub.f32 %v222, %v439
        %441 = vmatpush1.msra.mxu0 %v440
        %442 = vmatprep.subr.mxu0 0.0
        %v443 = vand.u32 %v221, 4294901760
        %v444 = vsub.f32 %v221, %v443
        %445 = vmatpush1.msra.mxu0 %v444
        %446 = vmatprep.subr.mxu0 0.0
        %447 = vmatpush2.msra.mxu0 0.0
        %448 = vmatprep.subr.mxu0 0.0
        %449 = vmatpush2.msra.mxu0 0.0
        %450 = vmatprep.subr.mxu0 0.0
        %451 = vmatpush2.msra.mxu0 0.0
        %452 = vmatprep.subr.mxu0 0.0
        %453 = vmatpush2.msra.mxu0 0.0
        %454 = vmatprep.subr.mxu0 0.0
        %455 = vmatpush2.msra.mxu0 0.0
        %456 = vmatprep.subr.mxu0 0.0
        %457 = vmatpush2.msra.mxu0 0.0
        %458 = vmatprep.subr.mxu0 0.0
        %459 = vmatpush2.msra.mxu0 0.0
        %460 = vmatprep.subr.mxu0 0.0
        %461 = vmatpush2.msra.mxu0 0.0
        %462 = vmatprep.subr.mxu0 0.0
        %463 = vmatpush2.msra.mxu0 0.0
        %464 = vmatprep.subr.mxu0 0.0
        %465 = vmatpush2.msra.mxu0 0.0
        %466 = vmatprep.subr.mxu0 0.0
        %467 = vmatpush2.msra.mxu0 0.0
        %468 = vmatprep.subr.mxu0 0.0
        %469 = vmatpush2.msra.mxu0 0.0
        %470 = vmatprep.subr.mxu0 0.0
        %471 = vmatpush2.msra.mxu0 0.0
        %472 = vmatprep.subr.mxu0 0.0
        %473 = vmatpush2.msra.mxu0 0.0
        %474 = vmatprep.subr.mxu0 0.0
        %475 = vmatpush2.msra.mxu0 0.0
        %476 = vmatprep.subr.mxu0 0.0
        %477 = vmatpush2.msra.mxu0 0.0
        %478 = vmatprep.mubr.f32.mxu0 0.0
        %v479 = vand.u32 %v234, 4294901760
        %v480 = vsub.f32 %v234, %v479
        %481 = vmatmul.mubr.f32.gmra.mxu0 %v480
        %v482 = vpop.f32.mrf.mxu0
        %v483 = vadd.f32 %v403, %v482
        %v484 = vpop.f32.mrf.mxu0
        %485 = vdwg.mxu0
        %486 = vmatprep.subr.mxu0 0.0
        %487 = vmatpush1.msra.mxu0 0.0
        %488 = vmatprep.subr.mxu0 0.0
        %489 = vmatpush1.msra.mxu0 0.0
        %490 = vmatprep.subr.mxu0 0.0
        %491 = vmatpush1.msra.mxu0 0.0
        %492 = vmatprep.subr.mxu0 0.0
        %493 = vmatpush1.msra.mxu0 0.0
        %494 = vmatprep.subr.mxu0 0.0
        %495 = vmatpush1.msra.mxu0 0.0
        %496 = vmatprep.subr.mxu0 0.0
        %497 = vmatpush1.msra.mxu0 0.0
        %498 = vmatprep.subr.mxu0 0.0
        %499 = vmatpush1.msra.mxu0 0.0
        %500 = vmatprep.subr.mxu0 0.0
        %501 = vmatpush1.msra.mxu0 0.0
        %502 = vmatprep.subr.mxu0 0.0
        %503 = vmatpush1.msra.mxu0 0.0
        %504 = vmatprep.subr.mxu0 0.0
        %505 = vmatpush1.msra.mxu0 0.0
        %506 = vmatprep.subr.mxu0 0.0
        %507 = vmatpush1.msra.mxu0 0.0
        %508 = vmatprep.subr.mxu0 0.0
        %509 = vmatpush1.msra.mxu0 0.0
        %510 = vmatprep.subr.mxu0 0.0
        %v511 = vand.u32 %v224, 4294901760
        %512 = vmatpush1.msra.mxu0 %v511
        %513 = vmatprep.subr.mxu0 0.0
        %v514 = vand.u32 %v223, 4294901760
        %515 = vmatpush1.msra.mxu0 %v514
        %516 = vmatprep.subr.mxu0 0.0
        %v517 = vand.u32 %v222, 4294901760
        %518 = vmatpush1.msra.mxu0 %v517
        %519 = vmatprep.subr.mxu0 0.0
        %v520 = vand.u32 %v221, 4294901760
        %521 = vmatpush1.msra.mxu0 %v520
        %522 = vmatprep.subr.mxu0 0.0
        %523 = vmatpush2.msra.mxu0 0.0
        %524 = vmatprep.subr.mxu0 0.0
        %525 = vmatpush2.msra.mxu0 0.0
        %526 = vmatprep.subr.mxu0 0.0
        %527 = vmatpush2.msra.mxu0 0.0
        %528 = vmatprep.subr.mxu0 0.0
        %529 = vmatpush2.msra.mxu0 0.0
        %530 = vmatprep.subr.mxu0 0.0
        %531 = vmatpush2.msra.mxu0 0.0
        %532 = vmatprep.subr.mxu0 0.0
        %533 = vmatpush2.msra.mxu0 0.0
        %534 = vmatprep.subr.mxu0 0.0
        %535 = vmatpush2.msra.mxu0 0.0
        %536 = vmatprep.subr.mxu0 0.0
        %537 = vmatpush2.msra.mxu0 0.0
        %538 = vmatprep.subr.mxu0 0.0
        %539 = vmatpush2.msra.mxu0 0.0
        %540 = vmatprep.subr.mxu0 0.0
        %541 = vmatpush2.msra.mxu0 0.0
        %542 = vmatprep.subr.mxu0 0.0
        %543 = vmatpush2.msra.mxu0 0.0
        %544 = vmatprep.subr.mxu0 0.0
        %545 = vmatpush2.msra.mxu0 0.0
        %546 = vmatprep.subr.mxu0 0.0
        %547 = vmatpush2.msra.mxu0 0.0
        %548 = vmatprep.subr.mxu0 0.0
        %549 = vmatpush2.msra.mxu0 0.0
        %550 = vmatprep.subr.mxu0 0.0
        %551 = vmatpush2.msra.mxu0 0.0
        %552 = vmatprep.subr.mxu0 0.0
        %553 = vmatpush2.msra.mxu0 0.0
        %554 = vmatprep.mubr.f32.mxu0 0.0
        %v555 = vand.u32 %v234, 4294901760
        %v556 = vsub.f32 %v234, %v555
        %v557 = vand.u32 %v556, 4294901760
        %558 = vmatmul.mubr.f32.gmra.mxu0 %v557
        %v559 = vpop.f32.mrf.mxu0
        %v560 = vadd.f32 %v483, %v559
        %v561 = vpop.f32.mrf.mxu0
        %562 = vdwg.mxu0
        %563 = vmatprep.subr.mxu0 0.0
        %564 = vmatpush1.msra.mxu0 0.0
        %565 = vmatprep.subr.mxu0 0.0
        %566 = vmatpush1.msra.mxu0 0.0
        %567 = vmatprep.subr.mxu0 0.0
        %568 = vmatpush1.msra.mxu0 0.0
        %569 = vmatprep.subr.mxu0 0.0
        %570 = vmatpush1.msra.mxu0 0.0
        %571 = vmatprep.subr.mxu0 0.0
        %572 = vmatpush1.msra.mxu0 0.0
        %573 = vmatprep.subr.mxu0 0.0
        %574 = vmatpush1.msra.mxu0 0.0
        %575 = vmatprep.subr.mxu0 0.0
        %576 = vmatpush1.msra.mxu0 0.0
        %577 = vmatprep.subr.mxu0 0.0
        %578 = vmatpush1.msra.mxu0 0.0
        %579 = vmatprep.subr.mxu0 0.0
        %580 = vmatpush1.msra.mxu0 0.0
        %581 = vmatprep.subr.mxu0 0.0
        %582 = vmatpush1.msra.mxu0 0.0
        %583 = vmatprep.subr.mxu0 0.0
        %584 = vmatpush1.msra.mxu0 0.0
        %585 = vmatprep.subr.mxu0 0.0
        %586 = vmatpush1.msra.mxu0 0.0
        %587 = vmatprep.subr.mxu0 0.0
        %v588 = vand.u32 %v224, 4294901760
        %v589 = vsub.f32 %v224, %v588
        %v590 = vand.u32 %v589, 4294901760
        %591 = vmatpush1.msra.mxu0 %v590
        %592 = vmatprep.subr.mxu0 0.0
        %v593 = vand.u32 %v223, 4294901760
        %v594 = vsub.f32 %v223, %v593
        %v595 = vand.u32 %v594, 4294901760
        %596 = vmatpush1.msra.mxu0 %v595
        %597 = vmatprep.subr.mxu0 0.0
        %v598 = vand.u32 %v222, 4294901760
        %v599 = vsub.f32 %v222, %v598
        %v600 = vand.u32 %v599, 4294901760
        %601 = vmatpush1.msra.mxu0 %v600
        %602 = vmatprep.subr.mxu0 0.0
        %v603 = vand.u32 %v221, 4294901760
        %v604 = vsub.f32 %v221, %v603
        %v605 = vand.u32 %v604, 4294901760
        %606 = vmatpush1.msra.mxu0 %v605
        %607 = vmatprep.subr.mxu0 0.0
        %608 = vmatpush2.msra.mxu0 0.0
        %609 = vmatprep.subr.mxu0 0.0
        %610 = vmatpush2.msra.mxu0 0.0
        %611 = vmatprep.subr.mxu0 0.0
        %612 = vmatpush2.msra.mxu0 0.0
        %613 = vmatprep.subr.mxu0 0.0
        %614 = vmatpush2.msra.mxu0 0.0
        %615 = vmatprep.subr.mxu0 0.0
        %616 = vmatpush2.msra.mxu0 0.0
        %617 = vmatprep.subr.mxu0 0.0
        %618 = vmatpush2.msra.mxu0 0.0
        %619 = vmatprep.subr.mxu0 0.0
        %620 = vmatpush2.msra.mxu0 0.0
        %621 = vmatprep.subr.mxu0 0.0
        %622 = vmatpush2.msra.mxu0 0.0
        %623 = vmatprep.subr.mxu0 0.0
        %624 = vmatpush2.msra.mxu0 0.0
        %625 = vmatprep.subr.mxu0 0.0
        %626 = vmatpush2.msra.mxu0 0.0
        %627 = vmatprep.subr.mxu0 0.0
        %628 = vmatpush2.msra.mxu0 0.0
        %629 = vmatprep.subr.mxu0 0.0
        %630 = vmatpush2.msra.mxu0 0.0
        %631 = vmatprep.subr.mxu0 0.0
        %632 = vmatpush2.msra.mxu0 0.0
        %633 = vmatprep.subr.mxu0 0.0
        %634 = vmatpush2.msra.mxu0 0.0
        %635 = vmatprep.subr.mxu0 0.0
        %636 = vmatpush2.msra.mxu0 0.0
        %637 = vmatprep.subr.mxu0 0.0
        %638 = vmatpush2.msra.mxu0 0.0
        %639 = vmatprep.mubr.f32.mxu0 0.0
        %v640 = vand.u32 %v234, 4294901760
        %641 = vmatmul.mubr.f32.gmra.mxu0 %v640
        %v642 = vpop.f32.mrf.mxu0
        %v643 = vadd.f32 %v560, %v642
        %v644 = vpop.f32.mrf.mxu0
        %645 = vdwg.mxu0
        %646 = vmatprep.subr.mxu0 0.0
        %647 = vmatpush1.msra.mxu0 0.0
        %648 = vmatprep.subr.mxu0 0.0
        %649 = vmatpush1.msra.mxu0 0.0
        %650 = vmatprep.subr.mxu0 0.0
        %651 = vmatpush1.msra.mxu0 0.0
        %652 = vmatprep.subr.mxu0 0.0
        %653 = vmatpush1.msra.mxu0 0.0
        %654 = vmatprep.subr.mxu0 0.0
        %655 = vmatpush1.msra.mxu0 0.0
        %656 = vmatprep.subr.mxu0 0.0
        %657 = vmatpush1.msra.mxu0 0.0
        %658 = vmatprep.subr.mxu0 0.0
        %659 = vmatpush1.msra.mxu0 0.0
        %660 = vmatprep.subr.mxu0 0.0
        %661 = vmatpush1.msra.mxu0 0.0
        %662 = vmatprep.subr.mxu0 0.0
        %663 = vmatpush1.msra.mxu0 0.0
        %664 = vmatprep.subr.mxu0 0.0
        %665 = vmatpush1.msra.mxu0 0.0
        %666 = vmatprep.subr.mxu0 0.0
        %667 = vmatpush1.msra.mxu0 0.0
        %668 = vmatprep.subr.mxu0 0.0
        %669 = vmatpush1.msra.mxu0 0.0
        %670 = vmatprep.subr.mxu0 0.0
        %v671 = vand.u32 %v224, 4294901760
        %672 = vmatpush1.msra.mxu0 %v671
        %673 = vmatprep.subr.mxu0 0.0
        %v674 = vand.u32 %v223, 4294901760
        %675 = vmatpush1.msra.mxu0 %v674
        %676 = vmatprep.subr.mxu0 0.0
        %v677 = vand.u32 %v222, 4294901760
        %678 = vmatpush1.msra.mxu0 %v677
        %679 = vmatprep.subr.mxu0 0.0
        %v680 = vand.u32 %v221, 4294901760
        %681 = vmatpush1.msra.mxu0 %v680
        %682 = vmatprep.subr.mxu0 0.0
        %683 = vmatpush2.msra.mxu0 0.0
        %684 = vmatprep.subr.mxu0 0.0
        %685 = vmatpush2.msra.mxu0 0.0
        %686 = vmatprep.subr.mxu0 0.0
        %687 = vmatpush2.msra.mxu0 0.0
        %688 = vmatprep.subr.mxu0 0.0
        %689 = vmatpush2.msra.mxu0 0.0
        %690 = vmatprep.subr.mxu0 0.0
        %691 = vmatpush2.msra.mxu0 0.0
        %692 = vmatprep.subr.mxu0 0.0
        %693 = vmatpush2.msra.mxu0 0.0
        %694 = vmatprep.subr.mxu0 0.0
        %695 = vmatpush2.msra.mxu0 0.0
        %696 = vmatprep.subr.mxu0 0.0
        %697 = vmatpush2.msra.mxu0 0.0
        %698 = vmatprep.subr.mxu0 0.0
        %699 = vmatpush2.msra.mxu0 0.0
        %700 = vmatprep.subr.mxu0 0.0
        %701 = vmatpush2.msra.mxu0 0.0
        %702 = vmatprep.subr.mxu0 0.0
        %703 = vmatpush2.msra.mxu0 0.0
        %704 = vmatprep.subr.mxu0 0.0
        %705 = vmatpush2.msra.mxu0 0.0
        %706 = vmatprep.subr.mxu0 0.0
        %707 = vmatpush2.msra.mxu0 0.0
        %708 = vmatprep.subr.mxu0 0.0
        %709 = vmatpush2.msra.mxu0 0.0
        %710 = vmatprep.subr.mxu0 0.0
        %711 = vmatpush2.msra.mxu0 0.0
        %712 = vmatprep.subr.mxu0 0.0
        %713 = vmatpush2.msra.mxu0 0.0
        %714 = vmatprep.mubr.f32.mxu0 0.0
        %v715 = vand.u32 %v234, 4294901760
        %716 = vmatmul.mubr.f32.gmra.mxu0 %v715
        %v717 = vpop.f32.mrf.mxu0
        %v718 = vadd.f32 %v643, %v717
        %v719 = vpop.f32.mrf.mxu0
        %720 = vdwg.mxu0
        %v721 = vtanh.pop %v718
        %v722 = vld [vmem:[%s3] sm:$0xff]
        %v723 = vld [vmem:[%s3 + $0x8] sm:$0xff]
        %v724 = vld [vmem:[%s4] sm:$0x1]
        %v726 = vlaneseq
        %v727 = vshrl.u32 %v726, 7
        %v728 = vsub.s32 0, %v727
        %v729 = vrot.slane %v724, %v728
        %vm731 = vcmask 130048
        %v733 = vsel %vm731, %v721, 0
        %735 = vmatprep.subr.mxu0 0.0
        %736 = vmatpush1.msra.mxu0 0.0
        %737 = vmatprep.subr.mxu0 0.0
        %738 = vmatpush1.msra.mxu0 0.0
        %739 = vmatprep.subr.mxu0 0.0
        %740 = vmatpush1.msra.mxu0 0.0
        %741 = vmatprep.subr.mxu0 0.0
        %742 = vmatpush1.msra.mxu0 0.0
        %743 = vmatprep.subr.mxu0 0.0
        %744 = vmatpush1.msra.mxu0 0.0
        %745 = vmatprep.subr.mxu0 0.0
        %746 = vmatpush1.msra.mxu0 0.0
        %747 = vmatprep.subr.mxu0 0.0
        %748 = vmatpush1.msra.mxu0 0.0
        %749 = vmatprep.subr.mxu0 0.0
        %750 = vmatpush1.msra.mxu0 0.0
        %751 = vmatprep.subr.mxu0 0.0
        %752 = vmatpush1.msra.mxu0 0.0
        %753 = vmatprep.subr.mxu0 0.0
        %754 = vmatpush1.msra.mxu0 0.0
        %755 = vmatprep.subr.mxu0 0.0
        %756 = vmatpush1.msra.mxu0 0.0
        %757 = vmatprep.subr.mxu0 0.0
        %758 = vmatpush1.msra.mxu0 0.0
        %759 = vmatprep.subr.mxu0 0.0
        %760 = vmatpush1.msra.mxu0 0.0
        %761 = vmatprep.subr.mxu0 0.0
        %762 = vmatpush1.msra.mxu0 0.0
        %763 = vmatprep.subr.mxu0 0.0
        %v764 = vand.u32 %v723, 4294901760
        %765 = vmatpush1.msra.mxu0 %v764
        %766 = vmatprep.subr.mxu0 0.0
        %v767 = vand.u32 %v722, 4294901760
        %768 = vmatpush1.msra.mxu0 %v767
        %769 = vmatprep.subr.mxu0 0.0
        %770 = vmatpush2.msra.mxu0 0.0
        %771 = vmatprep.subr.mxu0 0.0
        %772 = vmatpush2.msra.mxu0 0.0
        %773 = vmatprep.subr.mxu0 0.0
        %774 = vmatpush2.msra.mxu0 0.0
        %775 = vmatprep.subr.mxu0 0.0
        %776 = vmatpush2.msra.mxu0 0.0
        %777 = vmatprep.subr.mxu0 0.0
        %778 = vmatpush2.msra.mxu0 0.0
        %779 = vmatprep.subr.mxu0 0.0
        %780 = vmatpush2.msra.mxu0 0.0
        %781 = vmatprep.subr.mxu0 0.0
        %782 = vmatpush2.msra.mxu0 0.0
        %783 = vmatprep.subr.mxu0 0.0
        %784 = vmatpush2.msra.mxu0 0.0
        %785 = vmatprep.subr.mxu0 0.0
        %786 = vmatpush2.msra.mxu0 0.0
        %787 = vmatprep.subr.mxu0 0.0
        %788 = vmatpush2.msra.mxu0 0.0
        %789 = vmatprep.subr.mxu0 0.0
        %790 = vmatpush2.msra.mxu0 0.0
        %791 = vmatprep.subr.mxu0 0.0
        %792 = vmatpush2.msra.mxu0 0.0
        %793 = vmatprep.subr.mxu0 0.0
        %794 = vmatpush2.msra.mxu0 0.0
        %795 = vmatprep.subr.mxu0 0.0
        %796 = vmatpush2.msra.mxu0 0.0
        %797 = vmatprep.subr.mxu0 0.0
        %798 = vmatpush2.msra.mxu0 0.0
        %799 = vmatprep.subr.mxu0 0.0
        %800 = vmatpush2.msra.mxu0 0.0
        %801 = vmatprep.mubr.f32.mxu0 0.0
        %v802 = vand.u32 %v733, 4294901760
        %v803 = vsub.f32 %v733, %v802
        %v804 = vand.u32 %v803, 4294901760
        %v805 = vsub.f32 %v803, %v804
        %v806 = vand.u32 %v805, 4294901760
        %807 = vmatmul.mubr.f32.gmra.mxu0 %v806
        %v808 = vpop.f32.mrf.mxu0
        %v809 = vadd.f32 %v729, %v808
        %v810 = vpop.f32.mrf.mxu0
        %811 = vdwg.mxu0
        %812 = vmatprep.subr.mxu0 0.0
        %813 = vmatpush1.msra.mxu0 0.0
        %814 = vmatprep.subr.mxu0 0.0
        %815 = vmatpush1.msra.mxu0 0.0
        %816 = vmatprep.subr.mxu0 0.0
        %817 = vmatpush1.msra.mxu0 0.0
        %818 = vmatprep.subr.mxu0 0.0
        %819 = vmatpush1.msra.mxu0 0.0
        %820 = vmatprep.subr.mxu0 0.0
        %821 = vmatpush1.msra.mxu0 0.0
        %822 = vmatprep.subr.mxu0 0.0
        %823 = vmatpush1.msra.mxu0 0.0
        %824 = vmatprep.subr.mxu0 0.0
        %825 = vmatpush1.msra.mxu0 0.0
        %826 = vmatprep.subr.mxu0 0.0
        %827 = vmatpush1.msra.mxu0 0.0
        %828 = vmatprep.subr.mxu0 0.0
        %829 = vmatpush1.msra.mxu0 0.0
        %830 = vmatprep.subr.mxu0 0.0
        %831 = vmatpush1.msra.mxu0 0.0
        %832 = vmatprep.subr.mxu0 0.0
        %833 = vmatpush1.msra.mxu0 0.0
        %834 = vmatprep.subr.mxu0 0.0
        %835 = vmatpush1.msra.mxu0 0.0
        %836 = vmatprep.subr.mxu0 0.0
        %837 = vmatpush1.msra.mxu0 0.0
        %838 = vmatprep.subr.mxu0 0.0
        %839 = vmatpush1.msra.mxu0 0.0
        %840 = vmatprep.subr.mxu0 0.0
        %v841 = vand.u32 %v723, 4294901760
        %v842 = vsub.f32 %v723, %v841
        %v843 = vand.u32 %v842, 4294901760
        %v844 = vsub.f32 %v842, %v843
        %v845 = vand.u32 %v844, 4294901760
        %846 = vmatpush1.msra.mxu0 %v845
        %847 = vmatprep.subr.mxu0 0.0
        %v848 = vand.u32 %v722, 4294901760
        %v849 = vsub.f32 %v722, %v848
        %v850 = vand.u32 %v849, 4294901760
        %v851 = vsub.f32 %v849, %v850
        %v852 = vand.u32 %v851, 4294901760
        %853 = vmatpush1.msra.mxu0 %v852
        %854 = vmatprep.subr.mxu0 0.0
        %855 = vmatpush2.msra.mxu0 0.0
        %856 = vmatprep.subr.mxu0 0.0
        %857 = vmatpush2.msra.mxu0 0.0
        %858 = vmatprep.subr.mxu0 0.0
        %859 = vmatpush2.msra.mxu0 0.0
        %860 = vmatprep.subr.mxu0 0.0
        %861 = vmatpush2.msra.mxu0 0.0
        %862 = vmatprep.subr.mxu0 0.0
        %863 = vmatpush2.msra.mxu0 0.0
        %864 = vmatprep.subr.mxu0 0.0
        %865 = vmatpush2.msra.mxu0 0.0
        %866 = vmatprep.subr.mxu0 0.0
        %867 = vmatpush2.msra.mxu0 0.0
        %868 = vmatprep.subr.mxu0 0.0
        %869 = vmatpush2.msra.mxu0 0.0
        %870 = vmatprep.subr.mxu0 0.0
        %871 = vmatpush2.msra.mxu0 0.0
        %872 = vmatprep.subr.mxu0 0.0
        %873 = vmatpush2.msra.mxu0 0.0
        %874 = vmatprep.subr.mxu0 0.0
        %875 = vmatpush2.msra.mxu0 0.0
        %876 = vmatprep.subr.mxu0 0.0
        %877 = vmatpush2.msra.mxu0 0.0
        %878 = vmatprep.subr.mxu0 0.0
        %879 = vmatpush2.msra.mxu0 0.0
        %880 = vmatprep.subr.mxu0 0.0
        %881 = vmatpush2.msra.mxu0 0.0
        %882 = vmatprep.subr.mxu0 0.0
        %883 = vmatpush2.msra.mxu0 0.0
        %884 = vmatprep.subr.mxu0 0.0
        %885 = vmatpush2.msra.mxu0 0.0
        %886 = vmatprep.mubr.f32.mxu0 0.0
        %v887 = vand.u32 %v733, 4294901760
        %888 = vmatmul.mubr.f32.gmra.mxu0 %v887
        %v889 = vpop.f32.mrf.mxu0
        %v890 = vadd.f32 %v809, %v889
        %v891 = vpop.f32.mrf.mxu0
        %892 = vdwg.mxu0
        %893 = vmatprep.subr.mxu0 0.0
        %894 = vmatpush1.msra.mxu0 0.0
        %895 = vmatprep.subr.mxu0 0.0
        %896 = vmatpush1.msra.mxu0 0.0
        %897 = vmatprep.subr.mxu0 0.0
        %898 = vmatpush1.msra.mxu0 0.0
        %899 = vmatprep.subr.mxu0 0.0
        %900 = vmatpush1.msra.mxu0 0.0
        %901 = vmatprep.subr.mxu0 0.0
        %902 = vmatpush1.msra.mxu0 0.0
        %903 = vmatprep.subr.mxu0 0.0
        %904 = vmatpush1.msra.mxu0 0.0
        %905 = vmatprep.subr.mxu0 0.0
        %906 = vmatpush1.msra.mxu0 0.0
        %907 = vmatprep.subr.mxu0 0.0
        %908 = vmatpush1.msra.mxu0 0.0
        %909 = vmatprep.subr.mxu0 0.0
        %910 = vmatpush1.msra.mxu0 0.0
        %911 = vmatprep.subr.mxu0 0.0
        %912 = vmatpush1.msra.mxu0 0.0
        %913 = vmatprep.subr.mxu0 0.0
        %914 = vmatpush1.msra.mxu0 0.0
        %915 = vmatprep.subr.mxu0 0.0
        %916 = vmatpush1.msra.mxu0 0.0
        %917 = vmatprep.subr.mxu0 0.0
        %918 = vmatpush1.msra.mxu0 0.0
        %919 = vmatprep.subr.mxu0 0.0
        %920 = vmatpush1.msra.mxu0 0.0
        %921 = vmatprep.subr.mxu0 0.0
        %v922 = vand.u32 %v723, 4294901760
        %v923 = vsub.f32 %v723, %v922
        %924 = vmatpush1.msra.mxu0 %v923
        %925 = vmatprep.subr.mxu0 0.0
        %v926 = vand.u32 %v722, 4294901760
        %v927 = vsub.f32 %v722, %v926
        %928 = vmatpush1.msra.mxu0 %v927
        %929 = vmatprep.subr.mxu0 0.0
        %930 = vmatpush2.msra.mxu0 0.0
        %931 = vmatprep.subr.mxu0 0.0
        %932 = vmatpush2.msra.mxu0 0.0
        %933 = vmatprep.subr.mxu0 0.0
        %934 = vmatpush2.msra.mxu0 0.0
        %935 = vmatprep.subr.mxu0 0.0
        %936 = vmatpush2.msra.mxu0 0.0
        %937 = vmatprep.subr.mxu0 0.0
        %938 = vmatpush2.msra.mxu0 0.0
        %939 = vmatprep.subr.mxu0 0.0
        %940 = vmatpush2.msra.mxu0 0.0
        %941 = vmatprep.subr.mxu0 0.0
        %942 = vmatpush2.msra.mxu0 0.0
        %943 = vmatprep.subr.mxu0 0.0
        %944 = vmatpush2.msra.mxu0 0.0
        %945 = vmatprep.subr.mxu0 0.0
        %946 = vmatpush2.msra.mxu0 0.0
        %947 = vmatprep.subr.mxu0 0.0
        %948 = vmatpush2.msra.mxu0 0.0
        %949 = vmatprep.subr.mxu0 0.0
        %950 = vmatpush2.msra.mxu0 0.0
        %951 = vmatprep.subr.mxu0 0.0
        %952 = vmatpush2.msra.mxu0 0.0
        %953 = vmatprep.subr.mxu0 0.0
        %954 = vmatpush2.msra.mxu0 0.0
        %955 = vmatprep.subr.mxu0 0.0
        %956 = vmatpush2.msra.mxu0 0.0
        %957 = vmatprep.subr.mxu0 0.0
        %958 = vmatpush2.msra.mxu0 0.0
        %959 = vmatprep.subr.mxu0 0.0
        %960 = vmatpush2.msra.mxu0 0.0
        %961 = vmatprep.mubr.f32.mxu0 0.0
        %v962 = vand.u32 %v733, 4294901760
        %v963 = vsub.f32 %v733, %v962
        %964 = vmatmul.mubr.f32.gmra.mxu0 %v963
        %v965 = vpop.f32.mrf.mxu0
        %v966 = vadd.f32 %v890, %v965
        %v967 = vpop.f32.mrf.mxu0
        %968 = vdwg.mxu0
        %969 = vmatprep.subr.mxu0 0.0
        %970 = vmatpush1.msra.mxu0 0.0
        %971 = vmatprep.subr.mxu0 0.0
        %972 = vmatpush1.msra.mxu0 0.0
        %973 = vmatprep.subr.mxu0 0.0
        %974 = vmatpush1.msra.mxu0 0.0
        %975 = vmatprep.subr.mxu0 0.0
        %976 = vmatpush1.msra.mxu0 0.0
        %977 = vmatprep.subr.mxu0 0.0
        %978 = vmatpush1.msra.mxu0 0.0
        %979 = vmatprep.subr.mxu0 0.0
        %980 = vmatpush1.msra.mxu0 0.0
        %981 = vmatprep.subr.mxu0 0.0
        %982 = vmatpush1.msra.mxu0 0.0
        %983 = vmatprep.subr.mxu0 0.0
        %984 = vmatpush1.msra.mxu0 0.0
        %985 = vmatprep.subr.mxu0 0.0
        %986 = vmatpush1.msra.mxu0 0.0
        %987 = vmatprep.subr.mxu0 0.0
        %988 = vmatpush1.msra.mxu0 0.0
        %989 = vmatprep.subr.mxu0 0.0
        %990 = vmatpush1.msra.mxu0 0.0
        %991 = vmatprep.subr.mxu0 0.0
        %992 = vmatpush1.msra.mxu0 0.0
        %993 = vmatprep.subr.mxu0 0.0
        %994 = vmatpush1.msra.mxu0 0.0
        %995 = vmatprep.subr.mxu0 0.0
        %996 = vmatpush1.msra.mxu0 0.0
        %997 = vmatprep.subr.mxu0 0.0
        %v998 = vand.u32 %v723, 4294901760
        %999 = vmatpush1.msra.mxu0 %v998
        %1000 = vmatprep.subr.mxu0 0.0
        %v1001 = vand.u32 %v722, 4294901760
        %1002 = vmatpush1.msra.mxu0 %v1001
        %1003 = vmatprep.subr.mxu0 0.0
        %1004 = vmatpush2.msra.mxu0 0.0
        %1005 = vmatprep.subr.mxu0 0.0
        %1006 = vmatpush2.msra.mxu0 0.0
        %1007 = vmatprep.subr.mxu0 0.0
        %1008 = vmatpush2.msra.mxu0 0.0
        %1009 = vmatprep.subr.mxu0 0.0
        %1010 = vmatpush2.msra.mxu0 0.0
        %1011 = vmatprep.subr.mxu0 0.0
        %1012 = vmatpush2.msra.mxu0 0.0
        %1013 = vmatprep.subr.mxu0 0.0
        %1014 = vmatpush2.msra.mxu0 0.0
        %1015 = vmatprep.subr.mxu0 0.0
        %1016 = vmatpush2.msra.mxu0 0.0
        %1017 = vmatprep.subr.mxu0 0.0
        %1018 = vmatpush2.msra.mxu0 0.0
        %1019 = vmatprep.subr.mxu0 0.0
        %1020 = vmatpush2.msra.mxu0 0.0
        %1021 = vmatprep.subr.mxu0 0.0
        %1022 = vmatpush2.msra.mxu0 0.0
        %1023 = vmatprep.subr.mxu0 0.0
        %1024 = vmatpush2.msra.mxu0 0.0
        %1025 = vmatprep.subr.mxu0 0.0
        %1026 = vmatpush2.msra.mxu0 0.0
        %1027 = vmatprep.subr.mxu0 0.0
        %1028 = vmatpush2.msra.mxu0 0.0
        %1029 = vmatprep.subr.mxu0 0.0
        %1030 = vmatpush2.msra.mxu0 0.0
        %1031 = vmatprep.subr.mxu0 0.0
        %1032 = vmatpush2.msra.mxu0 0.0
        %1033 = vmatprep.subr.mxu0 0.0
        %1034 = vmatpush2.msra.mxu0 0.0
        %1035 = vmatprep.mubr.f32.mxu0 0.0
        %v1036 = vand.u32 %v733, 4294901760
        %v1037 = vsub.f32 %v733, %v1036
        %v1038 = vand.u32 %v1037, 4294901760
        %1039 = vmatmul.mubr.f32.gmra.mxu0 %v1038
        %v1040 = vpop.f32.mrf.mxu0
        %v1041 = vadd.f32 %v966, %v1040
        %v1042 = vpop.f32.mrf.mxu0
        %1043 = vdwg.mxu0
        %1044 = vmatprep.subr.mxu0 0.0
        %1045 = vmatpush1.msra.mxu0 0.0
        %1046 = vmatprep.subr.mxu0 0.0
        %1047 = vmatpush1.msra.mxu0 0.0
        %1048 = vmatprep.subr.mxu0 0.0
        %1049 = vmatpush1.msra.mxu0 0.0
        %1050 = vmatprep.subr.mxu0 0.0
        %1051 = vmatpush1.msra.mxu0 0.0
        %1052 = vmatprep.subr.mxu0 0.0
        %1053 = vmatpush1.msra.mxu0 0.0
        %1054 = vmatprep.subr.mxu0 0.0
        %1055 = vmatpush1.msra.mxu0 0.0
        %1056 = vmatprep.subr.mxu0 0.0
        %1057 = vmatpush1.msra.mxu0 0.0
        %1058 = vmatprep.subr.mxu0 0.0
        %1059 = vmatpush1.msra.mxu0 0.0
        %1060 = vmatprep.subr.mxu0 0.0
        %1061 = vmatpush1.msra.mxu0 0.0
        %1062 = vmatprep.subr.mxu0 0.0
        %1063 = vmatpush1.msra.mxu0 0.0
        %1064 = vmatprep.subr.mxu0 0.0
        %1065 = vmatpush1.msra.mxu0 0.0
        %1066 = vmatprep.subr.mxu0 0.0
        %1067 = vmatpush1.msra.mxu0 0.0
        %1068 = vmatprep.subr.mxu0 0.0
        %1069 = vmatpush1.msra.mxu0 0.0
        %1070 = vmatprep.subr.mxu0 0.0
        %1071 = vmatpush1.msra.mxu0 0.0
        %1072 = vmatprep.subr.mxu0 0.0
        %v1073 = vand.u32 %v723, 4294901760
        %v1074 = vsub.f32 %v723, %v1073
        %v1075 = vand.u32 %v1074, 4294901760
        %1076 = vmatpush1.msra.mxu0 %v1075
        %1077 = vmatprep.subr.mxu0 0.0
        %v1078 = vand.u32 %v722, 4294901760
        %v1079 = vsub.f32 %v722, %v1078
        %v1080 = vand.u32 %v1079, 4294901760
        %1081 = vmatpush1.msra.mxu0 %v1080
        %1082 = vmatprep.subr.mxu0 0.0
        %1083 = vmatpush2.msra.mxu0 0.0
        %1084 = vmatprep.subr.mxu0 0.0
        %1085 = vmatpush2.msra.mxu0 0.0
        %1086 = vmatprep.subr.mxu0 0.0
        %1087 = vmatpush2.msra.mxu0 0.0
        %1088 = vmatprep.subr.mxu0 0.0
        %1089 = vmatpush2.msra.mxu0 0.0
        %1090 = vmatprep.subr.mxu0 0.0
        %1091 = vmatpush2.msra.mxu0 0.0
        %1092 = vmatprep.subr.mxu0 0.0
        %1093 = vmatpush2.msra.mxu0 0.0
        %1094 = vmatprep.subr.mxu0 0.0
        %1095 = vmatpush2.msra.mxu0 0.0
        %1096 = vmatprep.subr.mxu0 0.0
        %1097 = vmatpush2.msra.mxu0 0.0
        %1098 = vmatprep.subr.mxu0 0.0
        %1099 = vmatpush2.msra.mxu0 0.0
        %1100 = vmatprep.subr.mxu0 0.0
        %1101 = vmatpush2.msra.mxu0 0.0
        %1102 = vmatprep.subr.mxu0 0.0
        %1103 = vmatpush2.msra.mxu0 0.0
        %1104 = vmatprep.subr.mxu0 0.0
        %1105 = vmatpush2.msra.mxu0 0.0
        %1106 = vmatprep.subr.mxu0 0.0
        %1107 = vmatpush2.msra.mxu0 0.0
        %1108 = vmatprep.subr.mxu0 0.0
        %1109 = vmatpush2.msra.mxu0 0.0
        %1110 = vmatprep.subr.mxu0 0.0
        %1111 = vmatpush2.msra.mxu0 0.0
        %1112 = vmatprep.subr.mxu0 0.0
        %1113 = vmatpush2.msra.mxu0 0.0
        %1114 = vmatprep.mubr.f32.mxu0 0.0
        %v1115 = vand.u32 %v733, 4294901760
        %1116 = vmatmul.mubr.f32.gmra.mxu0 %v1115
        %v1117 = vpop.f32.mrf.mxu0
        %v1118 = vadd.f32 %v1041, %v1117
        %v1119 = vpop.f32.mrf.mxu0
        %1120 = vdwg.mxu0
        %1121 = vmatprep.subr.mxu0 0.0
        %1122 = vmatpush1.msra.mxu0 0.0
        %1123 = vmatprep.subr.mxu0 0.0
        %1124 = vmatpush1.msra.mxu0 0.0
        %1125 = vmatprep.subr.mxu0 0.0
        %1126 = vmatpush1.msra.mxu0 0.0
        %1127 = vmatprep.subr.mxu0 0.0
        %1128 = vmatpush1.msra.mxu0 0.0
        %1129 = vmatprep.subr.mxu0 0.0
        %1130 = vmatpush1.msra.mxu0 0.0
        %1131 = vmatprep.subr.mxu0 0.0
        %1132 = vmatpush1.msra.mxu0 0.0
        %1133 = vmatprep.subr.mxu0 0.0
        %1134 = vmatpush1.msra.mxu0 0.0
        %1135 = vmatprep.subr.mxu0 0.0
        %1136 = vmatpush1.msra.mxu0 0.0
        %1137 = vmatprep.subr.mxu0 0.0
        %1138 = vmatpush1.msra.mxu0 0.0
        %1139 = vmatprep.subr.mxu0 0.0
        %1140 = vmatpush1.msra.mxu0 0.0
        %1141 = vmatprep.subr.mxu0 0.0
        %1142 = vmatpush1.msra.mxu0 0.0
        %1143 = vmatprep.subr.mxu0 0.0
        %1144 = vmatpush1.msra.mxu0 0.0
        %1145 = vmatprep.subr.mxu0 0.0
        %1146 = vmatpush1.msra.mxu0 0.0
        %1147 = vmatprep.subr.mxu0 0.0
        %1148 = vmatpush1.msra.mxu0 0.0
        %1149 = vmatprep.subr.mxu0 0.0
        %v1150 = vand.u32 %v723, 4294901760
        %1151 = vmatpush1.msra.mxu0 %v1150
        %1152 = vmatprep.subr.mxu0 0.0
        %v1153 = vand.u32 %v722, 4294901760
        %1154 = vmatpush1.msra.mxu0 %v1153
        %1155 = vmatprep.subr.mxu0 0.0
        %1156 = vmatpush2.msra.mxu0 0.0
        %1157 = vmatprep.subr.mxu0 0.0
        %1158 = vmatpush2.msra.mxu0 0.0
        %1159 = vmatprep.subr.mxu0 0.0
        %1160 = vmatpush2.msra.mxu0 0.0
        %1161 = vmatprep.subr.mxu0 0.0
        %1162 = vmatpush2.msra.mxu0 0.0
        %1163 = vmatprep.subr.mxu0 0.0
        %1164 = vmatpush2.msra.mxu0 0.0
        %1165 = vmatprep.subr.mxu0 0.0
        %1166 = vmatpush2.msra.mxu0 0.0
        %1167 = vmatprep.subr.mxu0 0.0
        %1168 = vmatpush2.msra.mxu0 0.0
        %1169 = vmatprep.subr.mxu0 0.0
        %1170 = vmatpush2.msra.mxu0 0.0
        %1171 = vmatprep.subr.mxu0 0.0
        %1172 = vmatpush2.msra.mxu0 0.0
        %1173 = vmatprep.subr.mxu0 0.0
        %1174 = vmatpush2.msra.mxu0 0.0
        %1175 = vmatprep.subr.mxu0 0.0
        %1176 = vmatpush2.msra.mxu0 0.0
        %1177 = vmatprep.subr.mxu0 0.0
        %1178 = vmatpush2.msra.mxu0 0.0
        %1179 = vmatprep.subr.mxu0 0.0
        %1180 = vmatpush2.msra.mxu0 0.0
        %1181 = vmatprep.subr.mxu0 0.0
        %1182 = vmatpush2.msra.mxu0 0.0
        %1183 = vmatprep.subr.mxu0 0.0
        %1184 = vmatpush2.msra.mxu0 0.0
        %1185 = vmatprep.subr.mxu0 0.0
        %1186 = vmatpush2.msra.mxu0 0.0
        %1187 = vmatprep.mubr.f32.mxu0 0.0
        %v1188 = vand.u32 %v733, 4294901760
        %1189 = vmatmul.mubr.f32.gmra.mxu0 %v1188
        %v1190 = vpop.f32.mrf.mxu0
        %v1191 = vadd.f32 %v1118, %v1190
        %v1192 = vpop.f32.mrf.mxu0
        %1193 = vdwg.mxu0
        %v1194 = vsel %vm232, %v1191, -inf
        %v1195 = vrot.slane %v1194, 4
        %v1196 = vmax.f32 %v1194, %v1195
        %v1197 = vrot.slane %v1196, 2
        %v1198 = vmax.f32 %v1196, %v1197
        %v1199 = vrot.slane %v1198, 1
        %v1200 = vmax.f32 %v1198, %v1199
        %v1201 = vsub.f32 %v1191, %v1200
        %v1202 = vmul.f32 %v1201, 1.442695
        %v1203 = vpow.pop %v1202
        %v1204 = vsel %vm232, %v1203, 0.0
        %v1205 = vrot.slane %v1204, 4
        %v1206 = vadd.f32 %v1204, %v1205
        %v1207 = vrot.slane %v1206, 2
        %v1208 = vadd.f32 %v1206, %v1207
        %v1209 = vrot.slane %v1208, 1
        %v1210 = vadd.f32 %v1208, %v1209
        %v1211 = vrcp.pop %v1210
        %v1212 = vmul.f32 %v1203, %v1211
        %v1213 = vmul.f32 %v1212, %v220
        %1214 = vst.msk [vmem:[%s215] sm:$0xff] %vm232, %v1213
        %s1215 = sand.u32 %s137, 1
        %s1216 = scalar_lea.sflag [#allocation3], %s1215
        %s1217 = sand.u32 %s137, 1
        %s1218 = smul.addr %s1217, 8
        %s1219 = scalar_lea.vmem [#allocation2], %s1218
        // Predicated region
        $region41: #{tpu_custom_call.1} parent=39 // pred_check
          %p1220 = pneg %p147
        $region42: #{tpu_custom_call.1} parent=39 // pred_check_branch
          %1222 = sbr.rel (%p1220) target = $region44
        $region43: #{tpu_custom_call.1} parent=39 // pred_region
          %s1224 = ssub.s32 128, 128
          %1225 = vsyncadd %s1216, %s1224
          %s1226 = smul.addr %s19, 128
          %s1227 = scalar_lea.hbm %s5, %s1226
          %s1229 = sshll.u32 %s1219, 4
          %s1230 = int_to_ptr.vmem [resolvable:$true] %s1229
          %1232 = dma.vmem_to_hbm [thread:$0]  %s1230, 128, %s1227, %s1216
        $region44: #{tpu_custom_call.1} parent=39 // pred_fallthru
          _
      $region40: #{tpu_custom_call.1} parent=5 // pred_fallthru
        _
      %p1233 = scmp.le.s32.totalorder 2, %s14
      // Predicated region
      $region45: #{tpu_custom_call.1} parent=5 // pred_check
        %p1234 = pneg %p1233
      $region46: #{tpu_custom_call.1} parent=5 // pred_check_branch
        %1236 = sbr.rel (%p1234) target = $region48
      $region47: #{tpu_custom_call.1} parent=5 // pred_region
        %s1237 = ssub.s32 %s14, 2
        // Predicated region
        $region49: #{tpu_custom_call.1} parent=47 // pred_check
          %p1238 = pneg %p153
        $region50: #{tpu_custom_call.1} parent=47 // pred_check_branch
          %1240 = sbr.rel (%p1238) target = $region52
        $region51: #{tpu_custom_call.1} parent=47 // pred_region
          %s1241 = sand.u32 %s138, 1
          %s1242 = scalar_lea.sflag [#allocation3], %s1241
          %s1243 = sand.u32 %s138, 1
          %s1244 = smul.addr %s1243, 8
          %s1245 = scalar_lea.vmem [#allocation2], %s1244
          %1246 = dma.done %s1242, 128
        $region52: #{tpu_custom_call.1} parent=47 // pred_fallthru
          _
      $region48: #{tpu_custom_call.1} parent=5 // pred_fallthru
        _
    $region6: #{tpu_custom_call.1} parent=1 // loop_footer
      %s18 = sadd.s32 1, %s14
    $region7: #{tpu_custom_call.1} parent=1 // loop_footer_branch
      %13 = sbr.rel target = $region3
    $region8: #{tpu_custom_call.1} parent=1 // loop_exit
      _
    %1247 = vsyncpa [#allocation3], 1
    %s1248 = scalar_lea.sflag [#allocation3], 1
    %1249 = vsyncpa %s1248, 1

</llo_original>
